<compile_context>
chip_gen: v7x
topology: tpu7x:2x2x1
jax: 0.10.0
libtpu: 0.0.40
codegen_flags: <defaults>
</compile_context>

<pallas_src>
import functools

import jax
import jax.numpy as jnp
from jax import lax
from jax.experimental import pallas as pl
from jax.experimental.pallas import tpu as pltpu


def _round_up(x, m):
    return ((x + m - 1) // m) * m


def _pick_row_tile(m_rows, row_align, batch, max_tile=256):
    """Pick a row tile (multiple of row_align) that minimizes padding and
    exposes >= 2 grid units when possible (v7x has 2 TensorCores)."""
    m_al = _round_up(m_rows, row_align)
    if m_al <= max_tile:
        tm = m_al
    else:
        best_tm, best_pad = None, None
        cand = max_tile
        while cand >= 128:
            pad = (-m_al) % cand
            if best_pad is None or pad < best_pad:
                best_tm, best_pad = cand, pad
            cand -= row_align
        tm = best_tm
    if batch * ((m_al + tm - 1) // tm) < 2 and m_al >= 2 * row_align:
        # Split the row axis so at least two parallel grid units exist.
        tm = _round_up((m_al + 1) // 2, row_align)
    m_pad = _round_up(m_al, tm)
    return tm, m_pad


def _patch_embed_kernel(x_ref, w_ref, pos_ref, o_ref):
    # One (tm, K) x (K, N) MXU matmul with fused (pos + bias [+ cls]) epilogue.
    acc = jnp.dot(x_ref[...], w_ref[...], preferred_element_type=jnp.float32)
    o_ref[...] = (acc + pos_ref[...]).astype(o_ref.dtype)


def prepare_embedding_params(weight, bias, cls_token, pos_emb, *,
                             compute_dtype=None):
    """One-time (outside jit) parameter prep.

    weight:    (hidden, C, P, P) Conv2d weight
    bias:      (hidden,)
    cls_token: (1, 1, hidden)
    pos_emb:   (1, num_patches + 1, hidden)
    Returns:
      w_p:       (K_pad, N_pad)  lane-dense, padded, compute-dtype weight
      pos_fused: (num_patches+1, N_pad)  row0 = cls+pos[0]; rows = pos[1:]+bias
    """
    hidden, C, P, _ = weight.shape
    K = C * P * P
    if compute_dtype is None:
        compute_dtype = weight.dtype
    compute_dtype = jnp.dtype(compute_dtype)

    K_pad = _round_up(K, 128)
    N_pad = _round_up(hidden, 128)

    w_mat = weight.reshape(hidden, K).T                      # (K, hidden)
    w_p = jnp.pad(w_mat, ((0, K_pad - K), (0, N_pad - hidden)))
    w_p = w_p.astype(compute_dtype)

    pos_f32 = pos_emb[0].astype(jnp.float32)                 # (M, hidden)
    cls_row = cls_token[0, 0].astype(jnp.float32) + pos_f32[0]       # no bias
    patch_rows = pos_f32[1:] + bias.astype(jnp.float32)[None, :]     # + bias
    pos_fused = jnp.concatenate([cls_row[None, :], patch_rows], axis=0)
    pos_fused = jnp.pad(pos_fused, ((0, 0), (0, N_pad - hidden)))
    # Memory-bound op: stream pos in the (narrow) compute dtype when sub-f32.
    pos_dtype = compute_dtype if compute_dtype.itemsize < 4 else jnp.float32
    pos_fused = pos_fused.astype(pos_dtype)
    return w_p, pos_fused


def embeddings_forward(x, w_p, pos_fused, *, patch_size, hidden,
                       compute_dtype=None):
    """Inference forward of ViT `Embeddings`.

    x:         (B, C, H, W)   NCHW image batch
    w_p:       (K_pad, N_pad) from prepare_embedding_params
    pos_fused: (num_patches+1, N_pad) from prepare_embedding_params
    returns    (B, num_patches + 1, hidden)
    """
    B, C, H, W = x.shape
    P = patch_size
    nh, nw = H // P, W // P
    num_patches = nh * nw
    K = C * P * P
    M = num_patches + 1                      # cls row folded into the kernel
    out_dtype = x.dtype
    if compute_dtype is None:
        compute_dtype = x.dtype
    compute_dtype = jnp.dtype(compute_dtype)

    K_pad, N_pad = w_p.shape
    assert pos_fused.shape == (M, N_pad), (pos_fused.shape, M, N_pad)

    itm = compute_dtype.itemsize
    # Sub-32-bit dtypes pack rows along sublanes: align rows to 16 for bf16.
    row_align = 8 if itm >= 4 else (16 if itm == 2 else 32)
    tm, M_pad = _pick_row_tile(M, row_align, B)

    # --- im2col glue (channel-major flattening == Conv2d weight order), with a
    # leading all-zero row for the cls token.  Producer is permitted to fuse
    # into the pallas call via allow_input_fusion.
    xp = x.reshape(B, C, nh, P, nw, P)
    xp = jnp.transpose(xp, (0, 2, 4, 1, 3, 5)).reshape(B, num_patches, K)
    xp = xp.astype(compute_dtype)
    xp = jnp.pad(xp, ((0, 0), (1, M_pad - M), (0, K_pad - K)))

    pos_p = jnp.pad(pos_fused, ((0, M_pad - M), (0, 0)))

    grid = (M_pad // tm, B)   # batch innermost -> pos tile reused across batch

    out_itm = jnp.dtype(out_dtype).itemsize
    cost = pl.CostEstimate(
        flops=2 * B * M_pad * K_pad * N_pad,
        transcendentals=0,
        bytes_accessed=(xp.size * itm
                        + w_p.size * w_p.dtype.itemsize
                        + pos_p.size * pos_p.dtype.itemsize
                        + B * M_pad * N_pad * out_itm),
    )

    # VMEM budget: double-buffered X/pos/out tiles + single-buffered W.
    vmem_est = (2 * tm * K_pad * itm
                + 1 * K_pad * N_pad * w_p.dtype.itemsize
                + 2 * tm * N_pad * pos_p.dtype.itemsize
                + 2 * tm * N_pad * out_itm)
    try:
        vmem_cap = pltpu.get_tpu_info().vmem_capacity_bytes
    except Exception:  # pragma: no cover - conservative fallback
        vmem_cap = 128 * 2 ** 20
    vmem_ceiling = int(vmem_cap * 3 // 4)     # headroom (v7x: ~48 MiB of 64)
    vmem_limit = int(min(vmem_ceiling, max(32 * 2 ** 20, 2 * vmem_est)))

    out = pl.pallas_call(
        _patch_embed_kernel,
        out_shape=jax.ShapeDtypeStruct((B, M_pad, N_pad), out_dtype),
        grid_spec=pltpu.PrefetchScalarGridSpec(
            num_scalar_prefetch=0,
            grid=grid,
            in_specs=[
                # X tile: depends on both grid axes.
                pl.BlockSpec((None, tm, K_pad), lambda t, b: (b, t, 0)),
                # Weight: constant index -> single buffer is enough.
                pl.BlockSpec((K_pad, N_pad), lambda t, b: (0, 0),
                             pipeline_mode=pl.Buffered(1)),
                # Fused pos(+bias+cls) tile: index depends only on the outer
                # axis -> not re-fetched across the inner batch loop.
                pl.BlockSpec((tm, N_pad), lambda t, b: (t, 0)),
            ],
            out_specs=pl.BlockSpec((None, tm, N_pad), lambda t, b: (b, t, 0)),
        ),
        compiler_params=pltpu.CompilerParams(
            dimension_semantics=("parallel", "parallel"),
            vmem_limit_bytes=vmem_limit,
            allow_input_fusion=[True, False, False]),
        cost_estimate=cost,
    )(xp, w_p, pos_p)

    # Strip the rounded-up tail rows / padded lanes only.
    # Dropout: inference-mode identity.
    return out[:, :M, :hidden]


if __name__ == "__main__":
    # Small ViT-style config: image 16x16, patch 4, 4 channels, hidden 32.
    B, C, IMG, P, HIDDEN = 2, 4, 16, 4, 32
    NUM_PATCHES = (IMG // P) ** 2

    key = jax.random.PRNGKey(0)
    kx, kw, kb, kc, kp = jax.random.split(key, 5)
    x = jax.random.normal(kx, (B, C, IMG, IMG), dtype=jnp.float32)
    weight = jax.random.normal(kw, (HIDDEN, C, P, P), dtype=jnp.float32) * 0.02
    bias = jax.random.normal(kb, (HIDDEN,), dtype=jnp.float32) * 0.02
    cls_token = jax.random.normal(kc, (1, 1, HIDDEN), dtype=jnp.float32)
    pos_emb = jax.random.normal(kp, (1, NUM_PATCHES + 1, HIDDEN), dtype=jnp.float32)

    # Reference (plain JAX): conv -> flatten(2).transpose(1,2) -> cat cls -> + pos.
    conv = lax.conv_general_dilated(
        x, weight, window_strides=(P, P), padding="VALID",
        dimension_numbers=("NCHW", "OIHW", "NCHW"))
    conv = conv + bias[None, :, None, None]
    patches_ref = jnp.transpose(conv.reshape(B, HIDDEN, -1), (0, 2, 1))
    cls_ref = jnp.broadcast_to(cls_token, (B, 1, HIDDEN))
    ref = jnp.concatenate([cls_ref, patches_ref], axis=1) + pos_emb

    # --- f32 operand path (exact check) ---
    w_p32, pos_p32 = prepare_embedding_params(weight, bias, cls_token, pos_emb)
    fwd_f32 = jax.jit(functools.partial(
        embeddings_forward, patch_size=P, hidden=HIDDEN))
    out = jax.block_until_ready(fwd_f32(x, w_p32, pos_p32))
    assert out.shape == (B, NUM_PATCHES + 1, HIDDEN), out.shape
    assert jnp.allclose(out, ref, atol=1e-4, rtol=1e-4), float(
        jnp.max(jnp.abs(out - ref)))

    # --- bf16 operand path (f32 MXU accumulation; v6e/v7x mem-bound win) ---
    w_pb, pos_pb = prepare_embedding_params(
        weight, bias, cls_token, pos_emb, compute_dtype=jnp.bfloat16)
    fwd_bf16 = jax.jit(functools.partial(
        embeddings_forward, patch_size=P, hidden=HIDDEN,
        compute_dtype=jnp.bfloat16))
    out_bf16 = jax.block_until_ready(fwd_bf16(x, w_pb, pos_pb))
    assert out_bf16.shape == (B, NUM_PATCHES + 1, HIDDEN), out_bf16.shape
    assert jnp.allclose(out_bf16, ref, atol=2e-2, rtol=2e-2), float(
        jnp.max(jnp.abs(out_bf16 - ref)))

    print("KERNEL_OK")
</pallas_src>

<mosaic_0001>
module attributes {stable_mosaic.version = 11 : i64} {
  func.func @_patch_embed_kernel(%arg0: i32, %arg1: i32, %arg2: memref<1x24x128xf32, #tpu.memory_space<vmem>>, %arg3: memref<128x128xf32, #tpu.memory_space<vmem>>, %arg4: memref<24x128xf32, #tpu.memory_space<vmem>>, %arg5: memref<1x24x128xf32, #tpu.memory_space<vmem>>) attributes {dimension_semantics = [#tpu.dimension_semantics<parallel>, #tpu.dimension_semantics<parallel>], iteration_bounds = array<i64: 1, 2>, scalar_prefetch = 0 : i64, scratch_operands = 0 : i64, tpu.core_type = #tpu.core_type<tc>, window_params = [{transform_indices = @transform_0, window_bounds = array<i64: 1, 24, 128>}, {pipeline_mode = #tpu.pipeline_mode<synchronous>, transform_indices = @transform_1, window_bounds = array<i64: 128, 128>}, {transform_indices = @transform_2, window_bounds = array<i64: 24, 128>}, {transform_indices = @transform_3, window_bounds = array<i64: 1, 24, 128>}]} {
    %c0 = arith.constant 0 : index
    %c0_0 = arith.constant 0 : index
    %c0_1 = arith.constant 0 : index
    %0 = vector.load %arg2[%c0, %c0_0, %c0_1] : memref<1x24x128xf32, #tpu.memory_space<vmem>>, vector<1x24x128xf32>
    %1 = vector.shape_cast %0 : vector<1x24x128xf32> to vector<24x128xf32>
    %c0_2 = arith.constant 0 : index
    %c0_3 = arith.constant 0 : index
    %2 = vector.load %arg3[%c0_2, %c0_3] : memref<128x128xf32, #tpu.memory_space<vmem>>, vector<128x128xf32>
    %cst = arith.constant dense<0.000000e+00> : vector<24x128xf32>
    %3 = tpu.matmul %1, %2, %cst {dimension_numbers = #tpu.dot_dimension_numbers<[1], [0], [0], [1], [0, 0, 1, 1], [], []>} : vector<24x128xf32>, vector<128x128xf32>, vector<24x128xf32> -> vector<24x128xf32>
    %c0_4 = arith.constant 0 : index
    %c0_5 = arith.constant 0 : index
    %4 = vector.load %arg4[%c0_4, %c0_5] : memref<24x128xf32, #tpu.memory_space<vmem>>, vector<24x128xf32>
    %5 = arith.addf %3, %4 : vector<24x128xf32>
    %c0_6 = arith.constant 0 : index
    %c0_7 = arith.constant 0 : index
    %c0_8 = arith.constant 0 : index
    %6 = vector.load %arg5[%c0_6, %c0_7, %c0_8] : memref<1x24x128xf32, #tpu.memory_space<vmem>>, vector<1x24x128xf32>
    %7 = vector.shape_cast %6 : vector<1x24x128xf32> to vector<24x128xf32>
    %8 = vector.shape_cast %5 : vector<24x128xf32> to vector<1x24x128xf32>
    tpu.vector_store %arg5[%c0_6, %c0_7, %c0_8], %8 {strides = array<i32>} : memref<1x24x128xf32, #tpu.memory_space<vmem>>, vector<1x24x128xf32>,
    return
  }
  func.func @transform_0(%arg0: i32, %arg1: i32) -> (i32, i32, i32) {
    %c0_i32 = arith.constant 0 : i32
    %c0_i32_0 = arith.constant 0 : i32
    return %arg1, %arg0, %c0_i32 : i32, i32, i32
  }
  func.func @transform_1(%arg0: i32, %arg1: i32) -> (i32, i32) {
    %c0_i32 = arith.constant 0 : i32
    %c0_i32_0 = arith.constant 0 : i32
    %c0_i32_1 = arith.constant 0 : i32
    return %c0_i32, %c0_i32_0 : i32, i32
  }
  func.func @transform_2(%arg0: i32, %arg1: i32) -> (i32, i32) {
    %c0_i32 = arith.constant 0 : i32
    %c0_i32_0 = arith.constant 0 : i32
    return %arg0, %c0_i32 : i32, i32
  }
  func.func @transform_3(%arg0: i32, %arg1: i32) -> (i32, i32, i32) {
    %c0_i32 = arith.constant 0 : i32
    %c0_i32_0 = arith.constant 0 : i32
    return %arg1, %arg0, %c0_i32 : i32, i32, i32
  }
}

</mosaic_0001>

<llo_original>
// kernel: embeddings_forward.2
$region0: #{embeddings_forward.2}
  #allocation0 [shape = 'u32[]', space=smem, size = 0x4, offset = 0x4, fixed_abs, tag = 'smem constant byte address 0x4 - core index']
  #allocation1 [shape = 'u32[144,128]{1,0:T(1,128)}', space=vmem, size = 0x12000, scoped, tag = 'internal scratch']
  #allocation2 [shape = 'u32[2048]{0}', space=vmem, size = 0x2000, scoped, tag = 'scoped memory for embeddings_forward.2']
  #allocation3 [shape = 'u32[2048]{0}', space=vmem, size = 0x2000, scoped, tag = 'scoped memory for embeddings_forward.2']
  #allocation4 [shape = 'u32[2048]{0}', space=vmem, size = 0x2000, scoped, tag = 'scoped memory for embeddings_forward.2']
  #allocation5 [shape = 'u32[2048]{0}', space=vmem, size = 0x2000, scoped, tag = 'scoped memory for embeddings_forward.2']
  #allocation6 [shape = 'u32[2048]{0}', space=vmem, size = 0x2000, scoped, tag = 'scoped memory for embeddings_forward.2']
  %s0 = inlined_call_operand.vmem [shape: f32[128,128], index: 0, kind: input, shape index: {}]
  %s1 = inlined_call_operand.vmem [shape: f32[24,128], index: 1, kind: input, shape index: {}]
  %s2 = inlined_call_operand.vmem [shape: f32[2,16,64], index: 2, kind: input, shape index: {}]
  %s3 = inlined_call_operand.<no memory space> [shape: f32[], index: 3, kind: input, shape index: {}]
  %s4 = inlined_call_operand.vmem [shape: f32[2,24,128], index: 4, kind: output, shape index: {}]
  %s5 = sld [smem:[#allocation0]]
  $region45: #{embeddings_forward.2} parent=0
    _
  %s7 = ssub.s32 1, %s5
  %s8 = scalar_select 0, %s7, %s5
  %v9 = vstv %s3
  loop: start=0, step=1, limit=4
  $region2: #{embeddings_forward.2} parent=0 // loop_pre_header
    _
  $region3: #{embeddings_forward.2} parent=0 // loop_header
    %s11 = sphi 0, %s15
    %p12 = scmp.ge.s32.totalorder %s11, 4
    %s18 = sphi 0, %s30
    %s19 = sphi 0, %s26
    %s20 = sphi 0, %s18
    %s21 = sphi 0, %s19
    %s22 = sphi 0, %s20
    %s23 = sphi 0, %s21
    %s35 = sphi 0, %s37
    %s38 = sphi 0, %s35
    %s39 = sphi 0, %s38
    %s55 = sphi 0, %s39
    %s59 = sphi 0, %s59
    %s61 = sphi 0, %s59
    %s62 = sphi 0, %s61
    %s76 = sphi 0, %s62
    %s82 = sphi 0, %s84
    %s85 = sphi 0, %s82
    %s86 = sphi 0, %s85
    %s102 = sphi 0, %s86
    %s110 = sphi 0, %s112
    %s113 = sphi 0, %s110
    %s114 = sphi 0, %s113
    %s130 = sphi 0, %s114
  $region4: #{embeddings_forward.2} parent=0 // loop_header_branch
    %14 = sbr.rel (%p12) target = $region8
  $region5: #{embeddings_forward.2} parent=0 // loop_body
    %s16 = ssub.s32 %s11, 1
    %s17 = ssub.s32 %s11, 2
    %s24 = sadd.s32 1, %s19
    %p25 = scmp.ge.s32.totalorder %s24, 2
    %s26 = scalar_select %p25, 0, %s24
    %s27 = sadd.s32 1, %s18
    %s28 = scalar_select %p25, %s27, %s18
    %p29 = scmp.ge.s32.totalorder %s28, 1
    %s30 = scalar_select %p29, 0, %s28
    %s31 = ssub.s32 %s19, %s26
    %s32 = ssub.s32 %s18, %s30
    %s33 = sor.u32 %s31, %s32
    %p34 = scmp.eq.s32.totalorder %s33, 0
    %s36 = sadd.s32 %s35, 1
    %s37 = scalar_select %p34, %s35, %s36
    %p40 = pneg %p34
    %p41 = scmp.eq.s32.totalorder %s11, 1
    %p42 = por %p40, %p41
    %p43 = scmp.ne.s32.totalorder %s35, %s38
    %p44 = scmp.eq.s32.totalorder %s11, 0
    %p45 = por %p43, %p44
    %p46 = scmp.ne.s32.totalorder %s35, %s38
    %p47 = scmp.eq.s32.totalorder %s16, 1
    %p48 = por %p46, %p47
    %p49 = scmp.ne.s32.totalorder %s38, %s39
    %p50 = scmp.eq.s32.totalorder %s16, 0
    %p51 = por %p49, %p50
    %p52 = scmp.ne.s32.totalorder %s38, %s39
    %p53 = scmp.eq.s32.totalorder %s17, 1
    %p54 = por %p52, %p53
    %p56 = scmp.ne.s32.totalorder %s39, %s55
    %p57 = scmp.eq.s32.totalorder %s17, 0
    %p58 = por %p56, %p57
    %s60 = sadd.s32 %s59, 1
    %p63 = scmp.eq.s32.totalorder %s11, 1
    %p64 = scmp.ne.s32.totalorder %s59, %s61
    %p65 = scmp.eq.s32.totalorder %s11, 0
    %p66 = por %p64, %p65
    %p67 = scmp.ne.s32.totalorder %s59, %s61
    %p68 = scmp.eq.s32.totalorder %s16, 1
    %p69 = por %p67, %p68
    %p70 = scmp.ne.s32.totalorder %s61, %s62
    %p71 = scmp.eq.s32.totalorder %s16, 0
    %p72 = por %p70, %p71
    %p73 = scmp.ne.s32.totalorder %s61, %s62
    %p74 = scmp.eq.s32.totalorder %s17, 1
    %p75 = por %p73, %p74
    %p77 = scmp.ne.s32.totalorder %s62, %s76
    %p78 = scmp.eq.s32.totalorder %s17, 0
    %p79 = por %p77, %p78
    %s80 = ssub.s32 %s18, %s30
    %p81 = scmp.eq.s32.totalorder %s80, 0
    %s83 = sadd.s32 %s82, 1
    %s84 = scalar_select %p81, %s82, %s83
    %p87 = pneg %p81
    %p88 = scmp.eq.s32.totalorder %s11, 1
    %p89 = por %p87, %p88
    %p90 = scmp.ne.s32.totalorder %s82, %s85
    %p91 = scmp.eq.s32.totalorder %s11, 0
    %p92 = por %p90, %p91
    %p93 = scmp.ne.s32.totalorder %s82, %s85
    %p94 = scmp.eq.s32.totalorder %s16, 1
    %p95 = por %p93, %p94
    %p96 = scmp.ne.s32.totalorder %s85, %s86
    %p97 = scmp.eq.s32.totalorder %s16, 0
    %p98 = por %p96, %p97
    %p99 = scmp.ne.s32.totalorder %s85, %s86
    %p100 = scmp.eq.s32.totalorder %s17, 1
    %p101 = por %p99, %p100
    %p103 = scmp.ne.s32.totalorder %s86, %s102
    %p104 = scmp.eq.s32.totalorder %s17, 0
    %p105 = por %p103, %p104
    %s106 = ssub.s32 %s19, %s26
    %s107 = ssub.s32 %s18, %s30
    %s108 = sor.u32 %s106, %s107
    %p109 = scmp.eq.s32.totalorder %s108, 0
    %s111 = sadd.s32 %s110, 1
    %s112 = scalar_select %p109, %s110, %s111
    %p115 = pneg %p109
    %p116 = scmp.eq.s32.totalorder %s11, 1
    %p117 = por %p115, %p116
    %p118 = scmp.ne.s32.totalorder %s110, %s113
    %p119 = scmp.eq.s32.totalorder %s11, 0
    %p120 = por %p118, %p119
    %p121 = scmp.ne.s32.totalorder %s110, %s113
    %p122 = scmp.eq.s32.totalorder %s16, 1
    %p123 = por %p121, %p122
    %p124 = scmp.ne.s32.totalorder %s113, %s114
    %p125 = scmp.eq.s32.totalorder %s16, 0
    %p126 = por %p124, %p125
    %p127 = scmp.ne.s32.totalorder %s113, %s114
    %p128 = scmp.eq.s32.totalorder %s17, 1
    %p129 = por %p127, %p128
    %p131 = scmp.ne.s32.totalorder %s114, %s130
    %p132 = scmp.eq.s32.totalorder %s17, 0
    %p133 = por %p131, %p132
    %p134 = scmp.le.s32.totalorder 1, %s11
    %p135 = scmp.lt.s32.totalorder %s11, 3
    %p136 = pnand %p134, %p135
    %p137 = pneg %p136
    // Predicated region
    $region9: #{embeddings_forward.2} parent=5 // pred_check
      _
    $region10: #{embeddings_forward.2} parent=5 // pred_check_branch
      %139 = sbr.rel (%p136) target = $region12
    $region11: #{embeddings_forward.2} parent=5 // pred_region
      %s140 = ssub.s32 %s11, 1
      // Predicated region
      $region13: #{embeddings_forward.2} parent=11 // pred_check
        %p141 = pneg %p72
      $region14: #{embeddings_forward.2} parent=11 // pred_check_branch
        %143 = sbr.rel (%p141) target = $region16
      $region15: #{embeddings_forward.2} parent=11 // pred_region
        _
      $region16: #{embeddings_forward.2} parent=11 // pred_fallthru
        _
      // Predicated region
      $region17: #{embeddings_forward.2} parent=11 // pred_check
        %p144 = pneg %p98
      $region18: #{embeddings_forward.2} parent=11 // pred_check_branch
        %146 = sbr.rel (%p144) target = $region20
      $region19: #{embeddings_forward.2} parent=11 // pred_region
        %s147 = smul.u32 3, %s20
        %p148 = scmp.lt.s32.totalorder %s147, 2
        %s149 = scalar_select %p148, %s147, 2
        %s150 = smul.addr %s149, 8
        %s151 = scalar_lea.vmem %s1, %s150
        %s152 = smul.u32 3, %s20
      $region20: #{embeddings_forward.2} parent=11 // pred_fallthru
        _
    $region12: #{embeddings_forward.2} parent=5 // pred_fallthru
      _
    %p153 = scmp.lt.s32.totalorder %s11, 2
    // Predicated region
    $region21: #{embeddings_forward.2} parent=5 // pred_check
      %p154 = pneg %p153
    $region22: #{embeddings_forward.2} parent=5 // pred_check_branch
      %156 = sbr.rel (%p154) target = $region24
    $region23: #{embeddings_forward.2} parent=5 // pred_region
      // Predicated region
      $region25: #{embeddings_forward.2} parent=23 // pred_check
        %p157 = pneg %p45
      $region26: #{embeddings_forward.2} parent=23 // pred_check_branch
        %159 = sbr.rel (%p157) target = $region28
      $region27: #{embeddings_forward.2} parent=23 // pred_region
        %s160 = smul.u32 3, %s18
        %s161 = ssub.s32 1, %s160
        %p162 = scmp.gt.s32.totalorder %s161, 0
        %s163 = scalar_select %p162, %s161, 0
        %s164 = ssub.s32 3, %s160
        %s165 = ssub.s32 %s164, %s163
        %s166 = smul.u32 128, %s165
        %p167 = scmp.lt.s32.totalorder %s19, 1
        %s168 = scalar_select %p167, %s19, 1
        %s169 = ssub.s32 %s160, 1
        %p170 = scmp.lt.s32.totalorder %s169, 1
        %s171 = scalar_select %p170, %s169, 1
        %s172 = smul.addr %s168, 2
        %s173 = sadd.s32 %s171, %s172
        %s174 = smul.addr %s173, 8
        %s175 = scalar_lea.vmem %s2, %s174
        %s176 = smul.u32 3, %s18
        %s177 = ssub.s32 1, %s176
        %p178 = scmp.gt.s32.totalorder %s177, 0
        %s179 = scalar_select %p178, %s177, 0
        %s180 = ssub.s32 3, %s176
        %s181 = ssub.s32 %s180, %s179
        %s182 = smul.u32 128, %s181
      $region28: #{embeddings_forward.2} parent=23 // pred_fallthru
        _
    $region24: #{embeddings_forward.2} parent=5 // pred_fallthru
      _
    %p183 = scmp.le.s32.totalorder 1, %s11
    %p184 = scmp.lt.s32.totalorder %s11, 3
    %p185 = pnand %p183, %p184
    %p186 = pneg %p185
    // Predicated region
    $region29: #{embeddings_forward.2} parent=5 // pred_check
      _
    $region30: #{embeddings_forward.2} parent=5 // pred_check_branch
      %188 = sbr.rel (%p185) target = $region32
    $region31: #{embeddings_forward.2} parent=5 // pred_region
      #allocation7 [shape = 'u8[12288]{0}', space=vmem, size = 0x3000, dematerialized = true, scoped, tag = 'FusionAdapter Buffer %fusion.1 = f32[2,24,128]{2,1,0:T(8,128)} fusion(%param_2.1, %param_3), kind=kLoop, calls=%fused_computation.2.clone, metadata={op_name="jit(embeddings_forward)/jit(_pad)/pad" stack_frame_id=9}']
      %s189 = ssub.s32 %s11, 1
      %s190 = smul.u32 3, %s20
      %s191 = ssub.s32 1, %s190
      %p192 = scmp.gt.s32.totalorder %s191, 0
      %s193 = scalar_select %p192, %s191, 0
      %s194 = ssub.s32 3, %s190
      %s195 = ssub.s32 %s194, %s193
      %s196 = smul.u32 128, %s195
      %p197 = scmp.lt.s32.totalorder %s21, 1
      %s198 = scalar_select %p197, %s21, 1
      %s199 = ssub.s32 %s190, 1
      %p200 = scmp.lt.s32.totalorder %s199, 1
      %s201 = scalar_select %p200, %s199, 1
      %s202 = smul.addr %s198, 2
      %s203 = sadd.s32 %s201, %s202
      %s204 = smul.addr %s203, 8
      %s205 = scalar_lea.vmem %s2, %s204
      %p206 = pneg %p51
      %p207 = pneg %p48
      %p208 = pneg %p72
      %p209 = pneg %p69
      %s210 = smul.u32 3, %s20
      %p211 = scmp.lt.s32.totalorder %s210, 2
      %s212 = scalar_select %p211, %s210, 2
      %s213 = smul.addr %s212, 8
      %s214 = scalar_lea.vmem %s1, %s213
      %p215 = pneg %p98
      %p216 = pneg %p95
      %p217 = pneg %p126
      %p218 = pneg %p123
      %s219 = smul.u32 3, %s20
      %p220 = scmp.lt.s32.totalorder %s21, 1
      %s221 = scalar_select %p220, %s21, 1
      %p222 = scmp.lt.s32.totalorder %s219, 2
      %s223 = scalar_select %p222, %s219, 2
      %s224 = smul.addr %s221, 3
      %s225 = sadd.s32 %s223, %s224
      %s226 = smul.addr %s225, 8
      %s227 = scalar_lea.vmem %s4, %s226
      %s228 = smul.u32 3, %s20
      %s229 = ssub.s32 1, %s228
      %p230 = scmp.gt.s32.totalorder %s229, 0
      %s231 = scalar_select %p230, %s229, 0
      %s232 = ssub.s32 3, %s228
      %s233 = ssub.s32 %s232, %s231
      %s234 = smul.u32 128, %s233
      %p235 = scmp.lt.s32.totalorder %s21, 1
      %s236 = scalar_select %p235, %s21, 1
      %s237 = ssub.s32 %s228, 1
      %p238 = scmp.lt.s32.totalorder %s237, 1
      %s239 = scalar_select %p238, %s237, 1
      %s240 = smul.addr %s236, 2
      %s241 = sadd.s32 %s239, %s240
      %s242 = smul.addr %s241, 8
      %s243 = scalar_lea.vmem %s2, %s242
      %s244 = smul.u32 3, %s20
      %s245 = ssub.s32 1, %s244
      %p246 = scmp.gt.s32.totalorder %s245, 0
      %s247 = scalar_select %p246, %s245, 0
      %s248 = ssub.s32 3, %s244
      %s249 = ssub.s32 %s248, %s247
      %s250 = smul.u32 128, %s249
      %s251 = smul.u32 3, %s20
      %p252 = scmp.lt.s32.totalorder %s251, 2
      %s253 = scalar_select %p252, %s251, 2
      %s254 = smul.addr %s253, 8
      %s255 = scalar_lea.vmem %s1, %s254
      %s256 = smul.u32 3, %s20
      %s257 = smul.u32 3, %s20
      %p258 = scmp.lt.s32.totalorder %s21, 1
      %s259 = scalar_select %p258, %s21, 1
      %p260 = scmp.lt.s32.totalorder %s257, 2
      %s261 = scalar_select %p260, %s257, 2
      %s262 = smul.addr %s259, 3
      %s263 = sadd.s32 %s261, %s262
      %s264 = smul.addr %s263, 8
      %s265 = scalar_lea.vmem %s4, %s264
      %s266 = smul.u32 3, %s20
      %s267 = ssub.s32 %s244, 1
      %s268 = ssub.s32 2, %s244
      %s269 = sor.u32 %s267, %s268
      %p270 = scmp.lt.s32.totalorder %s269, 0
      %s271 = scalar_select %p270, 0, 255
      %v272 = vld [vmem:[%s243] sm:%s271]
      %s273 = ssub.s32 %s244, 1
      %s274 = ssub.s32 2, %s244
      %s275 = sor.u32 %s273, %s274
      %v276 = vstv %s275
      %vm277 = vcmp.lt.s32.totalorder %v276, 0
      %v278 = vsel %vm277, %v9, %v272
      %v279 = vlaneseq
      %v280 = vand.u32 %v279, 127
      %vm282 = vcmp.lt.s32.totalorder %v280, 64
      %v283 = vsel %vm282, %v278, %v9
      %s284 = scalar_lea.vmem %s243, 8
      %s285 = sadd.s32 %s244, 1
      %s286 = ssub.s32 %s285, 1
      %s287 = ssub.s32 2, %s285
      %s288 = sor.u32 %s286, %s287
      %p289 = scmp.lt.s32.totalorder %s288, 0
      %s290 = scalar_select %p289, 0, 255
      %v291 = vld [vmem:[%s284] sm:%s290]
      %s292 = sadd.s32 %s244, 1
      %s293 = ssub.s32 %s292, 1
      %s294 = ssub.s32 2, %s292
      %s295 = sor.u32 %s293, %s294
      %v296 = vstv %s295
      %vm297 = vcmp.lt.s32.totalorder %v296, 0
      %v298 = vsel %vm297, %v9, %v291
      %v299 = vlaneseq
      %v300 = vand.u32 %v299, 127
      %vm302 = vcmp.lt.s32.totalorder %v300, 64
      %v303 = vsel %vm302, %v298, %v9
      %vm304 = vcmask 1046528
      %v305 = vsel %vm304, %v303, %v283
      %v306 = vrot.slane %v305, 7
      %308 = vst [vmem:[#allocation7] sm:$0xff] %v306
      %s309 = scalar_lea.vmem %s243, 16
      %s310 = sadd.s32 %s244, 2
      %s311 = ssub.s32 %s310, 1
      %s312 = ssub.s32 2, %s310
      %s313 = sor.u32 %s311, %s312
      %p314 = scmp.lt.s32.totalorder %s313, 0
      %s315 = scalar_select %p314, 0, 255
      %v316 = vld [vmem:[%s309] sm:%s315]
      %s317 = sadd.s32 %s244, 2
      %s318 = ssub.s32 %s317, 1
      %s319 = ssub.s32 2, %s317
      %s320 = sor.u32 %s318, %s319
      %v321 = vstv %s320
      %vm322 = vcmp.lt.s32.totalorder %v321, 0
      %v323 = vsel %vm322, %v9, %v316
      %v324 = vlaneseq
      %v325 = vand.u32 %v324, 127
      %vm327 = vcmp.lt.s32.totalorder %v325, 64
      %v328 = vsel %vm327, %v323, %v9
      %vm329 = vcmask 1046528
      %v330 = vsel %vm329, %v328, %v303
      %v331 = vrot.slane %v330, 7
      %s332 = scalar_lea.vmem [#allocation7], 8
      %334 = vst [vmem:[%s332] sm:$0xff] %v331
      %vm335 = vcmask 1046528
      %v336 = vsel %vm335, %v9, %v328
      %v337 = vrot.slane %v336, 7
      %s338 = scalar_lea.vmem [#allocation7], 16
      %340 = vst [vmem:[%s338] sm:$0xff] %v337
      %v341 = vld [vmem:[#allocation7] sm:$0xff]
      %v342 = vld [vmem:[#allocation7 + $0x8] sm:$0xff]
      %v343 = vld [vmem:[#allocation7 + $0x10] sm:$0xff]
      %v344 = vld [vmem:[%s0] sm:$0xff]
      %v345 = vld [vmem:[%s0 + $0x8] sm:$0xff]
      %v346 = vld [vmem:[%s0 + $0x10] sm:$0xff]
      %v347 = vld [vmem:[%s0 + $0x18] sm:$0xff]
      %v348 = vld [vmem:[%s0 + $0x20] sm:$0xff]
      %v349 = vld [vmem:[%s0 + $0x28] sm:$0xff]
      %v350 = vld [vmem:[%s0 + $0x30] sm:$0xff]
      %v351 = vld [vmem:[%s0 + $0x38] sm:$0xff]
      %v352 = vld [vmem:[%s0 + $0x40] sm:$0xff]
      %v353 = vld [vmem:[%s0 + $0x48] sm:$0xff]
      %v354 = vld [vmem:[%s0 + $0x50] sm:$0xff]
      %v355 = vld [vmem:[%s0 + $0x58] sm:$0xff]
      %v356 = vld [vmem:[%s0 + $0x60] sm:$0xff]
      %v357 = vld [vmem:[%s0 + $0x68] sm:$0xff]
      %v358 = vld [vmem:[%s0 + $0x70] sm:$0xff]
      %v359 = vld [vmem:[%s0 + $0x78] sm:$0xff]
      %v360 = vld [vmem:[%s255] sm:$0xff]
      %v361 = vld [vmem:[%s255 + $0x8] sm:$0xff]
      %v362 = vld [vmem:[%s255 + $0x10] sm:$0xff]
      %363 = vmatprep.subr.mxu0 0.0
      %364 = vmatpush1.msra.mxu0 %v344
      %365 = vmatprep.subr.mxu0 0.0
      %366 = vmatpush1.msra.mxu0 %v345
      %367 = vmatprep.subr.mxu0 0.0
      %368 = vmatpush1.msra.mxu0 %v346
      %369 = vmatprep.subr.mxu0 0.0
      %370 = vmatpush1.msra.mxu0 %v347
      %371 = vmatprep.subr.mxu0 0.0
      %372 = vmatpush1.msra.mxu0 %v348
      %373 = vmatprep.subr.mxu0 0.0
      %374 = vmatpush1.msra.mxu0 %v349
      %375 = vmatprep.subr.mxu0 0.0
      %376 = vmatpush1.msra.mxu0 %v350
      %377 = vmatprep.subr.mxu0 0.0
      %378 = vmatpush1.msra.mxu0 %v351
      %379 = vmatprep.subr.mxu0 0.0
      %380 = vmatpush1.msra.mxu0 %v352
      %381 = vmatprep.subr.mxu0 0.0
      %382 = vmatpush1.msra.mxu0 %v353
      %383 = vmatprep.subr.mxu0 0.0
      %384 = vmatpush1.msra.mxu0 %v354
      %385 = vmatprep.subr.mxu0 0.0
      %386 = vmatpush1.msra.mxu0 %v355
      %387 = vmatprep.subr.mxu0 0.0
      %388 = vmatpush1.msra.mxu0 %v356
      %389 = vmatprep.subr.mxu0 0.0
      %390 = vmatpush1.msra.mxu0 %v357
      %391 = vmatprep.subr.mxu0 0.0
      %392 = vmatpush1.msra.mxu0 %v358
      %393 = vmatprep.subr.mxu0 0.0
      %394 = vmatpush1.msra.mxu0 %v359
      %395 = vmatprep.subr.mxu0 0.0
      %396 = vmatpush1.msra.mxu0 0.0
      %397 = vmatprep.subr.mxu0 0.0
      %398 = vmatpush1.msra.mxu0 0.0
      %399 = vmatprep.subr.mxu0 0.0
      %400 = vmatpush1.msra.mxu0 0.0
      %401 = vmatprep.subr.mxu0 0.0
      %402 = vmatpush1.msra.mxu0 0.0
      %403 = vmatprep.subr.mxu0 0.0
      %404 = vmatpush1.msra.mxu0 0.0
      %405 = vmatprep.subr.mxu0 0.0
      %406 = vmatpush1.msra.mxu0 0.0
      %407 = vmatprep.subr.mxu0 0.0
      %408 = vmatpush1.msra.mxu0 0.0
      %409 = vmatprep.subr.mxu0 0.0
      %410 = vmatpush1.msra.mxu0 0.0
      %411 = vmatprep.subr.mxu0 0.0
      %412 = vmatpush1.msra.mxu0 0.0
      %413 = vmatprep.subr.mxu0 0.0
      %414 = vmatpush1.msra.mxu0 0.0
      %415 = vmatprep.subr.mxu0 0.0
      %416 = vmatpush1.msra.mxu0 0.0
      %417 = vmatprep.subr.mxu0 0.0
      %418 = vmatpush1.msra.mxu0 0.0
      %419 = vmatprep.subr.mxu0 0.0
      %420 = vmatpush1.msra.mxu0 0.0
      %421 = vmatprep.subr.mxu0 0.0
      %422 = vmatpush1.msra.mxu0 0.0
      %423 = vmatprep.subr.mxu0 0.0
      %424 = vmatpush1.msra.mxu0 0.0
      %425 = vmatprep.subr.mxu0 0.0
      %426 = vmatpush1.msra.mxu0 0.0
      %427 = vmatprep.mubr.f32.mxu0 0.0
      %428 = vmatmul.mubr.f32.gmra.mrb[0].mxu0 %v341
      %v429 = vpop.f32.mrb[0].mxu0
      %v430 = vadd.f32 %v360, %v429
      %v431 = vpop.f32.mrb[0].mxu0
      %432 = vmatprep.mubr.f32.mxu0 0.0
      %433 = vmatmul.mubr.f32.gmra.mrb[0].mxu0 %v342
      %v434 = vpop.f32.mrb[0].mxu0
      %v435 = vadd.f32 %v361, %v434
      %v436 = vpop.f32.mrb[0].mxu0
      %437 = vmatprep.mubr.f32.mxu0 0.0
      %438 = vmatmul.mubr.f32.gmra.mrb[0].mxu0 %v343
      %v439 = vpop.f32.mrb[0].mxu0
      %v440 = vadd.f32 %v362, %v439
      %v441 = vpop.f32.mrb[0].mxu0
      %442 = vdwg.mxu0
      %443 = vst [vmem:[%s265] sm:$0xff] %v430
      %444 = vst [vmem:[%s265 + $0x8] sm:$0xff] %v435
      %445 = vst [vmem:[%s265 + $0x10] sm:$0xff] %v440
      %s446 = smul.u32 3, %s20
      %p447 = scmp.lt.s32.totalorder %s21, 1
      %s448 = scalar_select %p447, %s21, 1
      %p449 = scmp.lt.s32.totalorder %s446, 2
      %s450 = scalar_select %p449, %s446, 2
      %s451 = smul.addr %s448, 3
      %s452 = sadd.s32 %s450, %s451
      %s453 = smul.addr %s452, 8
      %s454 = scalar_lea.vmem %s4, %s453
      // Predicated region
      $region33: #{embeddings_forward.2} parent=31 // pred_check
        %p455 = pneg %p123
      $region34: #{embeddings_forward.2} parent=31 // pred_check_branch
        %457 = sbr.rel (%p455) target = $region36
      $region35: #{embeddings_forward.2} parent=31 // pred_region
        %s458 = smul.u32 3, %s20
      $region36: #{embeddings_forward.2} parent=31 // pred_fallthru
        _
    $region32: #{embeddings_forward.2} parent=5 // pred_fallthru
      _
    %p459 = scmp.le.s32.totalorder 2, %s11
    // Predicated region
    $region37: #{embeddings_forward.2} parent=5 // pred_check
      %p460 = pneg %p459
    $region38: #{embeddings_forward.2} parent=5 // pred_check_branch
      %462 = sbr.rel (%p460) target = $region40
    $region39: #{embeddings_forward.2} parent=5 // pred_region
      %s463 = ssub.s32 %s11, 2
      // Predicated region
      $region41: #{embeddings_forward.2} parent=39 // pred_check
        %p464 = pneg %p129
      $region42: #{embeddings_forward.2} parent=39 // pred_check_branch
        %466 = sbr.rel (%p464) target = $region44
      $region43: #{embeddings_forward.2} parent=39 // pred_region
        %s467 = smul.u32 3, %s22
        %p468 = scmp.lt.s32.totalorder %s23, 1
        %s469 = scalar_select %p468, %s23, 1
        %p470 = scmp.lt.s32.totalorder %s467, 2
        %s471 = scalar_select %p470, %s467, 2
        %s472 = smul.addr %s469, 3
        %s473 = sadd.s32 %s471, %s472
        %s474 = smul.addr %s473, 8
        %s475 = scalar_lea.vmem %s4, %s474
      $region44: #{embeddings_forward.2} parent=39 // pred_fallthru
        _
    $region40: #{embeddings_forward.2} parent=5 // pred_fallthru
      _
  $region6: #{embeddings_forward.2} parent=0 // loop_footer
    %s15 = sadd.s32 1, %s11
  $region7: #{embeddings_forward.2} parent=0 // loop_footer_branch
    %10 = sbr.rel target = $region3
  $region8: #{embeddings_forward.2} parent=0 // loop_exit
    _

</llo_original>
